<compile_context>
chip_gen: v7x
topology: tpu7x:2x2x1
jax: 0.10.0
libtpu: 0.0.40
codegen_flags: <defaults>
</compile_context>

<pallas_src>
import functools

import jax
import jax.numpy as jnp
from jax.experimental import pallas as pl
from jax.experimental.pallas import tpu as pltpu

_SUBLANES = 16                      # legal sublane multiple for f32 and bf16
_CHUNK = 512                        # inner compute chunk (rows)
_TILE_VMEM_BUDGET = 16 * 1024 * 1024  # budget for the double-buffered streams
_MAX_TB = 32768                     # upper bound on the batch tile (rows)


def _round_up(x, m):
    return -(-x // m) * m


def _sine_activation_kernel(tau_ref, w_ref, b_ref, out_ref, *, periodic, chunk):
    # Loop-invariant loads / mask: built once per grid step and hoisted out of
    # the chunk loop (JAX does not CSE broadcast_in_dim inside loops).
    w = w_ref[...].astype(jnp.float32)                     # (F, O) = [w | w0]
    b = b_ref[...].astype(jnp.float32)                     # (1, O) = [b | b0]
    col = jax.lax.broadcasted_iota(jnp.int32, (chunk, w.shape[1]), 1)
    is_periodic = col < periodic

    nchunks = tau_ref.shape[0] // chunk                    # static

    def body(i, carry):
        r = pl.multiple_of(i * chunk, chunk)
        tau = tau_ref[pl.ds(r, chunk), :].astype(jnp.float32)          # (C, F)
        # Keep the tiny-K contraction on the MXU: it lives in the
        # vector-extended slot and costs the (saturated) VALU nothing.
        z = jnp.dot(tau, w, preferred_element_type=jnp.float32) + b    # (C, O)
        out = jnp.where(is_periodic, jnp.sin(z), z)
        out_ref[pl.ds(r, chunk), :] = out.astype(out_ref.dtype)
        return carry

    jax.lax.fori_loop(0, nchunks, body, 0)


def _choose_batch_tile(batch, bytes_per_row):
    """Rows per grid step: big enough to amortize step overhead, small enough
    for VMEM, and >= 2 tiles for large batches (v7x megacore)."""
    batch_r = _round_up(batch, _SUBLANES)
    if batch_r <= _CHUNK:
        return batch_r                            # one small tile, one chunk
    # Largest tile whose two double-buffered streams fit the VMEM budget.
    tb = _TILE_VMEM_BUDGET // (2 * bytes_per_row)
    tb = max(_CHUNK, (tb // _CHUNK) * _CHUNK)
    tb = min(tb, _MAX_TB)
    # v7x has 2 TensorCores: once each half-tile is still sizeable, cap the
    # tile so the "parallel" batch axis has at least 2 grid steps.
    half = _round_up(-(-batch // 2), _CHUNK)
    if half >= 1024:
        tb = min(tb, half)
    return min(tb, _round_up(batch_r, _CHUNK))


def sine_activation(tau, w, b, w0, b0, *, out_dtype=None):
    """Time2Vec sine embedding: (..., in_features) -> (..., out_features)."""
    orig_shape = tau.shape
    in_features = orig_shape[-1]
    tau2d = tau.reshape(-1, in_features)
    batch = tau2d.shape[0]

    periodic = w.shape[1]            # out_features - nmodes
    nmodes = w0.shape[1]
    out_features = periodic + nmodes
    out_dtype = tau.dtype if out_dtype is None else jnp.dtype(out_dtype)

    # Fuse weights / biases once outside the kernel: one matmul, no in-kernel
    # concatenate (weights are tiny; stays resident in VMEM across all tiles).
    w_cat = jnp.concatenate([w, w0], axis=1)                              # (F, O)
    b_cat = jnp.concatenate(
        [b.reshape(1, periodic), b0.reshape(1, nmodes)], axis=1)          # (1, O)

    in_itemsize = tau2d.dtype.itemsize
    out_itemsize = jnp.dtype(out_dtype).itemsize
    bytes_per_row = in_features * in_itemsize + out_features * out_itemsize

    tb = _choose_batch_tile(batch, bytes_per_row)
    chunk = min(_CHUNK, tb)
    grid = (pl.cdiv(batch, tb),)     # partial last block: no pad, no out[:batch]

    # VMEM limit from the actual footprint: double-buffered streams + resident
    # (double-buffered) weights + per-chunk f32 temporaries + headroom.
    stream_bytes = 2 * tb * bytes_per_row
    weight_bytes = 2 * (w_cat.size * w_cat.dtype.itemsize
                        + b_cat.size * b_cat.dtype.itemsize)
    chunk_tmp_bytes = 8 * chunk * out_features * 4
    vmem_limit = stream_bytes + weight_bytes + chunk_tmp_bytes + (4 << 20)
    vmem_limit = int(min(max(vmem_limit, 16 * 1024 * 1024), 48 * 1024 * 1024))

    kernel = functools.partial(_sine_activation_kernel,
                               periodic=periodic, chunk=chunk)

    out = pl.pallas_call(
        kernel,
        out_shape=jax.ShapeDtypeStruct((batch, out_features), out_dtype),
        grid=grid,
        in_specs=[
            # tau streams over the batch grid axis (double-buffered by Pallas).
            pl.BlockSpec((tb, in_features), lambda i: (i, 0)),
            # Fused weights / bias: constant block index -> stays resident.
            pl.BlockSpec((in_features, out_features), lambda i: (0, 0)),
            pl.BlockSpec((1, out_features), lambda i: (0, 0)),
        ],
        out_specs=pl.BlockSpec((tb, out_features), lambda i: (i, 0)),
        compiler_params=pltpu.CompilerParams(
            dimension_semantics=("parallel",),     # megacore sharding on v7x
            vmem_limit_bytes=vmem_limit,
        ),
    )(tau2d, w_cat, b_cat)

    return out.reshape(*orig_shape[:-1], out_features)


def init_params(key, in_features, nmodes, out_features, dtype=jnp.float32):
    """Parameter init matching the PyTorch module's shapes.

    w0: (in_features, nmodes)                xavier_uniform
    b0: (nmodes,)                            randn
    w : (in_features, out_features - nmodes) xavier_uniform
    b : (out_features - nmodes,)             randn
    """
    k0, k1, k2, k3 = jax.random.split(key, 4)
    periodic = out_features - nmodes

    def xavier(k, fan_in, fan_out):
        bound = (6.0 / (fan_in + fan_out)) ** 0.5
        return jax.random.uniform(k, (fan_in, fan_out), dtype, -bound, bound)

    w0 = xavier(k0, in_features, nmodes)
    b0 = jax.random.normal(k1, (nmodes,), dtype)
    w = xavier(k2, in_features, periodic)
    b = jax.random.normal(k3, (periodic,), dtype)
    return w, b, w0, b0


if __name__ == "__main__":
    in_features, nmodes, out_features = 4, 16, 48

    key = jax.random.PRNGKey(0)
    kp, kx = jax.random.split(key)
    w, b, w0, b0 = init_params(kp, in_features, nmodes, out_features)

    def reference(t):
        return jnp.concatenate([jnp.sin(t @ w + b), t @ w0 + b0], axis=-1)

    # 1) small batch: single (partial) tile
    tau = jax.random.normal(kx, (8, in_features), jnp.float32)
    out = jax.block_until_ready(sine_activation(tau, w, b, w0, b0))
    assert out.shape == (8, out_features), out.shape
    assert jnp.allclose(out, reference(tau), atol=1e-5, rtol=1e-5), "mismatch (batch=8)"

    # 2) awkward batch: exercises the partial last block (no pad / no slice)
    tau2 = jax.random.normal(jax.random.PRNGKey(7), (37, in_features), jnp.float32)
    out2 = jax.block_until_ready(sine_activation(tau2, w, b, w0, b0))
    assert out2.shape == (37, out_features), out2.shape
    assert jnp.allclose(out2, reference(tau2), atol=1e-5, rtol=1e-5), "mismatch (batch=37)"

    # 3) larger batch: exercises the inner chunk loop + partial block together
    tau3 = jax.random.normal(jax.random.PRNGKey(11), (1000, in_features), jnp.float32)
    out3 = jax.block_until_ready(sine_activation(tau3, w, b, w0, b0))
    assert out3.shape == (1000, out_features), out3.shape
    assert jnp.allclose(out3, reference(tau3), atol=1e-5, rtol=1e-5), "mismatch (batch=1000)"

    print("KERNEL_OK")
</pallas_src>

<mosaic_0001>
module attributes {stable_mosaic.version = 11 : i64} {
  func.func @_sine_activation_kernel(%arg0: i32, %arg1: memref<16x4xf32, #tpu.memory_space<vmem>>, %arg2: memref<4x48xf32, #tpu.memory_space<vmem>>, %arg3: memref<1x48xf32, #tpu.memory_space<vmem>>, %arg4: memref<16x48xf32, #tpu.memory_space<vmem>>) attributes {dimension_semantics = [#tpu.dimension_semantics<parallel>], iteration_bounds = array<i64: 1>, scalar_prefetch = 0 : i64, scratch_operands = 0 : i64, tpu.core_type = #tpu.core_type<tc>, window_params = [{transform_indices = @transform_0, window_bounds = array<i64: 16, 4>}, {pipeline_mode = #tpu.pipeline_mode<synchronous>, transform_indices = @transform_1, window_bounds = array<i64: 4, 48>}, {pipeline_mode = #tpu.pipeline_mode<synchronous>, transform_indices = @transform_2, window_bounds = array<i64: 1, 48>}, {transform_indices = @transform_3, window_bounds = array<i64: 16, 48>}]} {
    %c0 = arith.constant 0 : index
    %c0_0 = arith.constant 0 : index
    %0 = vector.load %arg2[%c0, %c0_0] : memref<4x48xf32, #tpu.memory_space<vmem>>, vector<4x48xf32>
    %c0_1 = arith.constant 0 : index
    %c0_2 = arith.constant 0 : index
    %1 = vector.load %arg3[%c0_1, %c0_2] : memref<1x48xf32, #tpu.memory_space<vmem>>, vector<1x48xf32>
    %2 = tpu.iota {dimensions = array<i32: 1>} : vector<16x48xi32>
    %c32_i32 = arith.constant 32 : i32
    %3 = vector.broadcast %c32_i32 : i32 to vector<16x48xi32>
    %4 = arith.cmpi slt, %2, %3 : vector<16x48xi32>
    %c0_i32 = arith.constant 0 : i32
    %c16_i32 = arith.constant 16 : i32
    %5 = arith.muli %c0_i32, %c16_i32 : i32
    %6 = tpu.assume_multiple %5, 16 : i32
    %7 = arith.index_cast %6 : i32 to index
    %c0_3 = arith.constant 0 : index
    %8 = vector.load %arg1[%7, %c0_3] : memref<16x4xf32, #tpu.memory_space<vmem>>, vector<16x4xf32>
    %cst = arith.constant dense<0.000000e+00> : vector<16x48xf32>
    %9 = tpu.matmul %8, %0, %cst {dimension_numbers = #tpu.dot_dimension_numbers<[1], [0], [0], [1], [0, 0, 1, 1], [], []>} : vector<16x4xf32>, vector<4x48xf32>, vector<16x48xf32> -> vector<16x48xf32>
    %10 = vector.broadcast %1 : vector<1x48xf32> to vector<16x48xf32>
    %11 = arith.addf %9, %10 : vector<16x48xf32>
    %12 = math.sin %11 : vector<16x48xf32>
    %13 = arith.select %4, %12, %11 : vector<16x48xi1>, vector<16x48xf32>
    %14 = arith.index_cast %6 : i32 to index
    %c0_4 = arith.constant 0 : index
    %15 = vector.load %arg4[%14, %c0_4] : memref<16x48xf32, #tpu.memory_space<vmem>>, vector<16x48xf32>
    tpu.vector_store %arg4[%14, %c0_4], %13 {strides = array<i32>} : memref<16x48xf32, #tpu.memory_space<vmem>>, vector<16x48xf32>,
    %c1_i32 = arith.constant 1 : i32
    return
  }
  func.func @transform_0(%arg0: i32) -> (i32, i32) {
    %c0_i32 = arith.constant 0 : i32
    %c0_i32_0 = arith.constant 0 : i32
    return %arg0, %c0_i32 : i32, i32
  }
  func.func @transform_1(%arg0: i32) -> (i32, i32) {
    %c0_i32 = arith.constant 0 : i32
    %c0_i32_0 = arith.constant 0 : i32
    %c0_i32_1 = arith.constant 0 : i32
    return %c0_i32, %c0_i32_0 : i32, i32
  }
  func.func @transform_2(%arg0: i32) -> (i32, i32) {
    %c0_i32 = arith.constant 0 : i32
    %c0_i32_0 = arith.constant 0 : i32
    %c0_i32_1 = arith.constant 0 : i32
    return %c0_i32, %c0_i32_0 : i32, i32
  }
  func.func @transform_3(%arg0: i32) -> (i32, i32) {
    %c0_i32 = arith.constant 0 : i32
    %c0_i32_0 = arith.constant 0 : i32
    return %arg0, %c0_i32 : i32, i32
  }
}

</mosaic_0001>

<llo_original>
// kernel: tpu_custom_call.1
$region0: #{tpu_custom_call.1}
  #allocation0 [shape = 'u32[]', space=smem, size = 0x4, offset = 0x4, fixed_abs, tag = 'smem constant byte address 0x4 - core index']
  #allocation1 [shape = 'u32[144,128]{1,0:T(1,128)}', space=vmem, size = 0x12000, scoped, tag = 'internal scratch']
  %s0 = inlined_call_operand.vmem [shape: f32[8,4], index: 0, kind: input, shape index: {}]
  %s1 = inlined_call_operand.vmem [shape: f32[4,48], index: 1, kind: input, shape index: {}]
  %s2 = inlined_call_operand.vmem [shape: f32[1,48], index: 2, kind: input, shape index: {}]
  %s3 = inlined_call_operand.hbm [shape: f32[8,48], index: 3, kind: output, shape index: {}]
  %s4 = sld [smem:[#allocation0]]
  $region22: #{tpu_custom_call.1} parent=0
    _
  %s6 = ssub.s32 1, %s4
  %s7 = scalar_select 0, %s6, %s4
  $region1: #{tpu_custom_call.1} parent=0
    #allocation2 [shape = 'u8[8192]{0}', space=vmem, size = 0x2000, scoped, tag = 'output window, operand 0, single buffered']
    #allocation3 [shape = 's32[1]{0}', space=sflag, size = 0x4, scoped, tag = 'scoped memory for tpu_custom_call.1']
    %8 = vsyncpa [#allocation3], 0
    // Predicated region
    $region2: #{tpu_custom_call.1} parent=1 // pred_check
      _
    $region3: #{tpu_custom_call.1} parent=1 // pred_check_branch
      %10 = sbr.rel (0) target = $region5
    $region4: #{tpu_custom_call.1} parent=1 // pred_region
      _
    $region5: #{tpu_custom_call.1} parent=1 // pred_fallthru
      _
    // Predicated region
    $region6: #{tpu_custom_call.1} parent=1 // pred_check
      _
    $region7: #{tpu_custom_call.1} parent=1 // pred_check_branch
      %12 = sbr.rel (0) target = $region9
    $region8: #{tpu_custom_call.1} parent=1 // pred_region
      _
    $region9: #{tpu_custom_call.1} parent=1 // pred_fallthru
      _
    // Predicated region
    $region10: #{tpu_custom_call.1} parent=1 // pred_check
      _
    $region11: #{tpu_custom_call.1} parent=1 // pred_check_branch
      %14 = sbr.rel (0) target = $region13
    $region12: #{tpu_custom_call.1} parent=1 // pred_region
      _
    $region13: #{tpu_custom_call.1} parent=1 // pred_fallthru
      _
    %v15 = vld [vmem:[%s1] sm:$0xf]
    %v16 = vld [vmem:[%s2] sm:$0x1]
    %v17 = vlaneseq
    %v18 = vand.u32 %v17, 127
    %vm19 = vcmp.lt.s32.totalorder %v18, 32
    %v20 = vld [vmem:[%s0] sm:$0xff]
    %v21 = vld [vmem:[%s0 + $0x8] sm:$0xff]
    %v23 = vlaneseq
    %v24 = vshrl.u32 %v23, 7
    %v25 = vsub.s32 0, %v24
    %v26 = vrot.slane %v16, %v25
    %vm28 = vcmask 31744
    %v30 = vsel %vm28, %v20, 0
    %v33 = vsel %vm28, %v21, 0
    %vm35 = vcmask 1043456
    %v37 = vsel %vm35, %v15, 0
    %39 = vmatprep.subr.mxu0 0.0
    %40 = vmatpush1.msra.mxu0 %v37
    %41 = vmatprep.subr.mxu0 0.0
    %42 = vmatpush1.msra.mxu0 0.0
    %43 = vmatprep.subr.mxu0 0.0
    %44 = vmatpush1.msra.mxu0 0.0
    %45 = vmatprep.subr.mxu0 0.0
    %46 = vmatpush1.msra.mxu0 0.0
    %47 = vmatprep.subr.mxu0 0.0
    %48 = vmatpush1.msra.mxu0 0.0
    %49 = vmatprep.subr.mxu0 0.0
    %50 = vmatpush1.msra.mxu0 0.0
    %51 = vmatprep.subr.mxu0 0.0
    %52 = vmatpush1.msra.mxu0 0.0
    %53 = vmatprep.subr.mxu0 0.0
    %54 = vmatpush1.msra.mxu0 0.0
    %55 = vmatprep.subr.mxu0 0.0
    %56 = vmatpush1.msra.mxu0 0.0
    %57 = vmatprep.subr.mxu0 0.0
    %58 = vmatpush1.msra.mxu0 0.0
    %59 = vmatprep.subr.mxu0 0.0
    %60 = vmatpush1.msra.mxu0 0.0
    %61 = vmatprep.subr.mxu0 0.0
    %62 = vmatpush1.msra.mxu0 0.0
    %63 = vmatprep.subr.mxu0 0.0
    %64 = vmatpush1.msra.mxu0 0.0
    %65 = vmatprep.subr.mxu0 0.0
    %66 = vmatpush1.msra.mxu0 0.0
    %67 = vmatprep.subr.mxu0 0.0
    %68 = vmatpush1.msra.mxu0 0.0
    %69 = vmatprep.subr.mxu0 0.0
    %70 = vmatpush1.msra.mxu0 0.0
    %71 = vmatprep.subr.mxu0 0.0
    %72 = vmatpush1.msra.mxu0 0.0
    %73 = vmatprep.subr.mxu0 0.0
    %74 = vmatpush1.msra.mxu0 0.0
    %75 = vmatprep.subr.mxu0 0.0
    %76 = vmatpush1.msra.mxu0 0.0
    %77 = vmatprep.subr.mxu0 0.0
    %78 = vmatpush1.msra.mxu0 0.0
    %79 = vmatprep.subr.mxu0 0.0
    %80 = vmatpush1.msra.mxu0 0.0
    %81 = vmatprep.subr.mxu0 0.0
    %82 = vmatpush1.msra.mxu0 0.0
    %83 = vmatprep.subr.mxu0 0.0
    %84 = vmatpush1.msra.mxu0 0.0
    %85 = vmatprep.subr.mxu0 0.0
    %86 = vmatpush1.msra.mxu0 0.0
    %87 = vmatprep.subr.mxu0 0.0
    %88 = vmatpush1.msra.mxu0 0.0
    %89 = vmatprep.subr.mxu0 0.0
    %90 = vmatpush1.msra.mxu0 0.0
    %91 = vmatprep.subr.mxu0 0.0
    %92 = vmatpush1.msra.mxu0 0.0
    %93 = vmatprep.subr.mxu0 0.0
    %94 = vmatpush1.msra.mxu0 0.0
    %95 = vmatprep.subr.mxu0 0.0
    %96 = vmatpush1.msra.mxu0 0.0
    %97 = vmatprep.subr.mxu0 0.0
    %98 = vmatpush1.msra.mxu0 0.0
    %99 = vmatprep.subr.mxu0 0.0
    %100 = vmatpush1.msra.mxu0 0.0
    %101 = vmatprep.subr.mxu0 0.0
    %102 = vmatpush1.msra.mxu0 0.0
    %103 = vmatprep.mubr.f32.mxu0 0.0
    %104 = vmatmul.mubr.f32.gmra.mrb[0].mxu0 %v30
    %v105 = vpop.f32.mrb[0].mxu0
    %v106 = vadd.f32 %v26, %v105
    %v107 = vpop.f32.mrb[0].mxu0
    %108 = vmatprep.mubr.f32.mxu0 0.0
    %109 = vmatmul.mubr.f32.gmra.mrb[0].mxu0 %v33
    %v110 = vpop.f32.mrb[0].mxu0
    %v111 = vadd.f32 %v26, %v110
    %v112 = vpop.f32.mrb[0].mxu0
    %113 = vdwg.mxu0
    %v114 = vand.u32 2147483647, %v106
    %vm115 = vcmp.le.f32.partialorder %v114, 0.7853982
    %vm116 = vcmp.lt.s32.totalorder %v106, 0
    %v117 = vand.u32 %v106, 2139095040
    %v118 = vshrl.u32 %v117, 23
    %v119 = vsub.s32 %v118, 127
    %v120 = vand.u32 2147483647, %v106
    %v121 = vand.u32 %v120, 8388607
    %v122 = vor.u32 %v121, 8388608
    %v123 = vsub.s32 0, %v122
    %v124 = vadd.s32 %v119, 1
    %vm125 = vcmp.gt.s32.totalorder %v124, 0
    %v126 = vsel %vm125, %v124, 0
    %v127 = vshrl.u32 %v126, 5
    %v128 = vand.u32 %v126, 31
    %v129 = vsub.s32 32, %v128
    %v130 = vshrl.u32 683565275, %v129
    %v131 = vshll.u32 683565275, %v128
    %v132 = vshrl.u32 2475754826, %v129
    %v133 = vor.u32 %v131, %v132
    %v134 = vshll.u32 2475754826, %v128
    %v135 = vshrl.u32 2131351028, %v129
    %v136 = vor.u32 %v134, %v135
    %v137 = vshll.u32 2131351028, %v128
    %v138 = vshrl.u32 2102212464, %v129
    %v139 = vor.u32 %v137, %v138
    %v140 = vshll.u32 2102212464, %v128
    %v141 = vshrl.u32 920167782, %v129
    %v142 = vor.u32 %v140, %v141
    %v143 = vshll.u32 920167782, %v128
    %v144 = vshrl.u32 1326507024, %v129
    %v145 = vor.u32 %v143, %v144
    %vm146 = vcmp.lt.s32.totalorder %v127, 1
    %vm147 = vcmp.lt.s32.totalorder %v127, 2
    %vm148 = vcmp.lt.s32.totalorder %v127, 3
    %vm149 = vcmp.lt.s32.totalorder %v127, 4
    %v150 = vsel %vm146, %v130, %v133
    %v151 = vsel %vm149, %v139, 2102212464
    %v152 = vsel %vm148, %v136, %v151
    %v153 = vsel %vm147, %v150, %v152
    %v154 = vsel %vm146, %v133, %v136
    %v155 = vsel %vm149, %v142, 920167782
    %v156 = vsel %vm148, %v139, %v155
    %v157 = vsel %vm147, %v154, %v156
    %v158 = vsel %vm146, %v136, %v139
    %v159 = vsel %vm149, %v145, 1326507024
    %v160 = vsel %vm148, %v142, %v159
    %v161 = vsel %vm147, %v158, %v160
    %v162 = vshll.u32 %v122, 8
    %v163 = vmul.u32.u64.compose %v162, %v161
    %v164 = vextract.low.u32 %v163
    %v165 = vextract.high.u32 %v163
    %v166 = vmul.u32.u64.compose %v162, %v157
    %v167 = vextract.low.u32 %v166
    %v168 = vextract.high.u32 %v166
    %v169 = vmul.u32 %v162, %v153
    %v170 = vadd.s32 %v165, %v167
    %vm171 = vc.u32 %v165, %v167
    %v172 = vadd.s32 %v168, 1
    %v173 = vsel %vm171, %v172, %v168
    %v174 = vadd.s32 %v169, %v173
    %v175 = vadd.s32 %v174, 536870912
    %v176 = vshrl.u32 %v175, 30
    %v177 = vshll.u32 %v176, 30
    %v178 = vsub.s32 %v174, %v177
    %vm179 = vcmp.lt.s32.totalorder %v178, 0
    %v180 = vsub.s32 0, %v178
    %v181 = vsel %vm179, %v180, %v178
    %v182 = vclz %v181
    %v183 = vsub.s32 %v182, 2
    %vm184 = vcmp.gt.s32.totalorder 0, %v183
    %v185 = vsel %vm184, 0, %v183
    %v186 = vsub.s32 32, %v185
    %v187 = vshll.u32 %v178, %v185
    %v188 = vshrl.u32 %v170, %v186
    %v189 = vor.u32 %v187, %v188
    %v190 = vsub.s32 4294967266, %v185
    %v191 = vadd.s32 %v190, 127
    %v192 = vshll.u32 %v191, 23
    %v193 = vor.u32 4788187, %v192
    %v194 = vand.u32 2147483647, %v193
    %v196 = vcvt.s32.f32 %v189
    %v197 = vmul.f32 %v196, %v194
    %v198 = vxor.u32 %v197, 2147483648
    %v199 = vsel %vm116, %v198, %v197
    %v200 = vsub.s32 4, %v176
    %v201 = vsel %vm116, %v200, %v176
    %v202 = vsel %vm115, %v106, %v199
    %v203 = vsel %vm115, 0, %v201
    %v204 = vcosq.f32.pop %v202
    %v205 = vsinq.f32.pop %v202
    %vm206 = vweird.f32 %v106
    %v207 = vadd.s32 %v203, 3
    %v208 = vand.u32 %v207, 3
    %vm209 = vcmp.lt.s32.totalorder %v208, 2
    %vm210 = vcmp.eq.s32.totalorder %v208, 0
    %v211 = vxor.u32 %v205, 2147483648
    %v212 = vsel %vm210, %v204, %v211
    %vm213 = vcmp.eq.s32.totalorder %v208, 2
    %v214 = vxor.u32 %v204, 2147483648
    %v215 = vsel %vm213, %v214, %v205
    %v216 = vsel %vm209, %v212, %v215
    %v217 = vsel %vm206, nan, %v216
    %v218 = vand.u32 2147483647, %v111
    %vm219 = vcmp.le.f32.partialorder %v218, 0.7853982
    %vm220 = vcmp.lt.s32.totalorder %v111, 0
    %v221 = vand.u32 %v111, 2139095040
    %v222 = vshrl.u32 %v221, 23
    %v223 = vsub.s32 %v222, 127
    %v224 = vand.u32 2147483647, %v111
    %v225 = vand.u32 %v224, 8388607
    %v226 = vor.u32 %v225, 8388608
    %v227 = vsub.s32 0, %v226
    %v228 = vadd.s32 %v223, 1
    %vm229 = vcmp.gt.s32.totalorder %v228, 0
    %v230 = vsel %vm229, %v228, 0
    %v231 = vshrl.u32 %v230, 5
    %v232 = vand.u32 %v230, 31
    %v233 = vsub.s32 32, %v232
    %v234 = vshrl.u32 683565275, %v233
    %v235 = vshll.u32 683565275, %v232
    %v236 = vshrl.u32 2475754826, %v233
    %v237 = vor.u32 %v235, %v236
    %v238 = vshll.u32 2475754826, %v232
    %v239 = vshrl.u32 2131351028, %v233
    %v240 = vor.u32 %v238, %v239
    %v241 = vshll.u32 2131351028, %v232
    %v242 = vshrl.u32 2102212464, %v233
    %v243 = vor.u32 %v241, %v242
    %v244 = vshll.u32 2102212464, %v232
    %v245 = vshrl.u32 920167782, %v233
    %v246 = vor.u32 %v244, %v245
    %v247 = vshll.u32 920167782, %v232
    %v248 = vshrl.u32 1326507024, %v233
    %v249 = vor.u32 %v247, %v248
    %vm250 = vcmp.lt.s32.totalorder %v231, 1
    %vm251 = vcmp.lt.s32.totalorder %v231, 2
    %vm252 = vcmp.lt.s32.totalorder %v231, 3
    %vm253 = vcmp.lt.s32.totalorder %v231, 4
    %v254 = vsel %vm250, %v234, %v237
    %v255 = vsel %vm253, %v243, 2102212464
    %v256 = vsel %vm252, %v240, %v255
    %v257 = vsel %vm251, %v254, %v256
    %v258 = vsel %vm250, %v237, %v240
    %v259 = vsel %vm253, %v246, 920167782
    %v260 = vsel %vm252, %v243, %v259
    %v261 = vsel %vm251, %v258, %v260
    %v262 = vsel %vm250, %v240, %v243
    %v263 = vsel %vm253, %v249, 1326507024
    %v264 = vsel %vm252, %v246, %v263
    %v265 = vsel %vm251, %v262, %v264
    %v266 = vshll.u32 %v226, 8
    %v267 = vmul.u32.u64.compose %v266, %v265
    %v268 = vextract.low.u32 %v267
    %v269 = vextract.high.u32 %v267
    %v270 = vmul.u32.u64.compose %v266, %v261
    %v271 = vextract.low.u32 %v270
    %v272 = vextract.high.u32 %v270
    %v273 = vmul.u32 %v266, %v257
    %v274 = vadd.s32 %v269, %v271
    %vm275 = vc.u32 %v269, %v271
    %v276 = vadd.s32 %v272, 1
    %v277 = vsel %vm275, %v276, %v272
    %v278 = vadd.s32 %v273, %v277
    %v279 = vadd.s32 %v278, 536870912
    %v280 = vshrl.u32 %v279, 30
    %v281 = vshll.u32 %v280, 30
    %v282 = vsub.s32 %v278, %v281
    %vm283 = vcmp.lt.s32.totalorder %v282, 0
    %v284 = vsub.s32 0, %v282
    %v285 = vsel %vm283, %v284, %v282
    %v286 = vclz %v285
    %v287 = vsub.s32 %v286, 2
    %vm288 = vcmp.gt.s32.totalorder 0, %v287
    %v289 = vsel %vm288, 0, %v287
    %v290 = vsub.s32 32, %v289
    %v291 = vshll.u32 %v282, %v289
    %v292 = vshrl.u32 %v274, %v290
    %v293 = vor.u32 %v291, %v292
    %v294 = vsub.s32 4294967266, %v289
    %v295 = vadd.s32 %v294, 127
    %v296 = vshll.u32 %v295, 23
    %v297 = vor.u32 4788187, %v296
    %v298 = vand.u32 2147483647, %v297
    %v300 = vcvt.s32.f32 %v293
    %v301 = vmul.f32 %v300, %v298
    %v302 = vxor.u32 %v301, 2147483648
    %v303 = vsel %vm220, %v302, %v301
    %v304 = vsub.s32 4, %v280
    %v305 = vsel %vm220, %v304, %v280
    %v306 = vsel %vm219, %v111, %v303
    %v307 = vsel %vm219, 0, %v305
    %v308 = vcosq.f32.pop %v306
    %v309 = vsinq.f32.pop %v306
    %vm310 = vweird.f32 %v111
    %v311 = vadd.s32 %v307, 3
    %v312 = vand.u32 %v311, 3
    %vm313 = vcmp.lt.s32.totalorder %v312, 2
    %vm314 = vcmp.eq.s32.totalorder %v312, 0
    %v315 = vxor.u32 %v309, 2147483648
    %v316 = vsel %vm314, %v308, %v315
    %vm317 = vcmp.eq.s32.totalorder %v312, 2
    %v318 = vxor.u32 %v308, 2147483648
    %v319 = vsel %vm317, %v318, %v309
    %v320 = vsel %vm313, %v316, %v319
    %v321 = vsel %vm310, nan, %v320
    %v322 = vsel %vm19, %v217, %v106
    %v323 = vsel %vm19, %v321, %v111
    %vm324 = vcmask 392192
    %325 = vst.msk [vmem:[#allocation2] sm:$0xff] %vm324, %v322
    %326 = vst.msk [vmem:[#allocation2 + $0x8] sm:$0xff] %vm324, %v323
    // Predicated region
    $region14: #{tpu_custom_call.1} parent=1 // pred_check
      _
    $region15: #{tpu_custom_call.1} parent=1 // pred_check_branch
      %328 = sbr.rel (0) target = $region17
    $region16: #{tpu_custom_call.1} parent=1 // pred_region
      %s330 = ssub.s32 256, 128
      %331 = vsyncadd [#allocation3], %s330
      %s332 = sshll.u32 [#allocation2], 4
      %s333 = int_to_ptr.vmem [resolvable:$true] %s332
      %338 = dma.vmem_to_hbm [thread:$0]  %s333, 128, %s3, [#allocation3], 128, 128, 8
    $region17: #{tpu_custom_call.1} parent=1 // pred_fallthru
      _
    // Predicated region
    $region18: #{tpu_custom_call.1} parent=1 // pred_check
      _
    $region19: #{tpu_custom_call.1} parent=1 // pred_check_branch
      %340 = sbr.rel (0) target = $region21
    $region20: #{tpu_custom_call.1} parent=1 // pred_region
      %341 = dma.done [#allocation3], 256
    $region21: #{tpu_custom_call.1} parent=1 // pred_fallthru
      _
    %342 = vsyncpa [#allocation3], 1

</llo_original>
